<compile_context>
chip_gen: v5e
topology: v5e:2x2
jax: 0.10.0
libtpu: 0.0.40
codegen_flags: <defaults>
</compile_context>

<pallas_src>
import functools

import numpy as np
import jax
import jax.numpy as jnp
from jax.experimental import pallas as pl
from jax.experimental.pallas import tpu as pltpu


# -----------------------------------------------------------------------------
# MB_projection: y = x @ W.T with W a fixed binary sparse matrix.
# Sparse "index table" formulation (no dense W is ever streamed).
# -----------------------------------------------------------------------------

def _mb_proj_sparse_kernel(idx_ref, x_ref, o_ref):
    # idx_ref: (E, TN) int32 -- columns of x feeding each of the TN outputs of this tile
    # x_ref:   (B, K)  f32   -- resident across the grid (constant block index)
    # o_ref:   (B, TN) f32
    k = x_ref.shape[1]
    tn = o_ref.shape[1]
    n_entries = idx_ref.shape[0]

    # Rebuild the (K, TN) slice of W^T on the fly (VPU iota-compares).  This is already
    # the MXU-native rhs layout, so the dot needs no transpose and the (B, TN) output
    # store is lane-dense.
    k_iota = jax.lax.broadcasted_iota(jnp.int32, (k, tn), 0)
    w_t = (k_iota == idx_ref[0:1, :]).astype(jnp.float32)
    for e in range(1, n_entries):                         # tiny static unroll (E ~ 4)
        w_t = w_t + (k_iota == idx_ref[e:e + 1, :]).astype(jnp.float32)

    o_ref[...] = jnp.dot(
        x_ref[...], w_t, preferred_element_type=jnp.float32
    ).astype(o_ref.dtype)


def _choose_tn(n, k, max_tn=512, onehot_vmem_budget=8 * 1024 * 1024):
    """Pick the output tile width: as wide as possible (lane-dense stores, less grid-step
    overhead) while (a) the on-the-fly (K, tn) f32 one-hot stays well inside VMEM (v7x
    only has 64 MiB) and (b) the grid keeps >= 2 steps when possible (v7x: 2 TCs/chip)."""
    cap = max(128, (onehot_vmem_budget // (4 * max(k, 1))) // 128 * 128)
    max_tn = min(max_tn, cap)
    cands = [t for t in (512, 384, 256, 128) if t <= max_tn and n % t == 0]
    for t in cands:
        if n // t >= 2:
            return t
    if cands:
        return cands[0]
    return n  # no 128-multiple divides n: fall back to one full-width block


def mb_projection(x, col_idx, *, tn=None):
    """y[b, r] = sum_e x[b, col_idx[e, r]]  ==  x @ W.T  (W binary, non-learned).

    x:       (batch, in_features) float32
    col_idx: (nb_proj_entries, out_features) int32
    returns: (batch, out_features) float32
    """
    b, k = x.shape
    n_entries, n = col_idx.shape
    if tn is None:
        tn = _choose_tn(n, k)
    assert n % tn == 0, "out_features must be a multiple of the output tile"

    # Pad batch to the f32 sublane multiple so output stores are unmasked.
    b_pad = ((b + 7) // 8) * 8
    if b_pad != b:
        x = jnp.pad(x, ((0, b_pad - b), (0, 0)))

    y = pl.pallas_call(
        _mb_proj_sparse_kernel,
        out_shape=jax.ShapeDtypeStruct((b_pad, n), jnp.float32),
        grid_spec=pltpu.PrefetchScalarGridSpec(
            num_scalar_prefetch=0,
            grid=(n // tn,),
            in_specs=[
                # Only the index tile is streamed from HBM per step (E*tn*4 bytes).
                pl.BlockSpec((n_entries, tn), lambda j: (0, j)),
                # x: constant block index -> resident across the grid.
                pl.BlockSpec((b_pad, k), lambda j: (0, 0)),
            ],
            out_specs=pl.BlockSpec((b_pad, tn), lambda j: (0, j)),
        ),
        compiler_params=pltpu.CompilerParams(
            dimension_semantics=("parallel",),      # shardable across v7x's 2 TCs
            vmem_limit_bytes=32 * 1024 * 1024,
        ),
    )(col_idx, x)
    return y[:b]


# -----------------------------------------------------------------------------
# PositiveLinear / AL_projection: fused y = act(x @ W.T + b) kernel (small layers).
# -----------------------------------------------------------------------------

def _linear_kernel(x_ref, wt_ref, b_ref, o_ref, *, activation):
    y = jnp.dot(x_ref[...], wt_ref[...], preferred_element_type=jnp.float32)
    y = y + b_ref[...]
    if activation == "leaky_relu":
        y = jnp.where(y >= 0, y, 0.01 * y)
    elif activation == "sigmoid":
        y = 1.0 / (1.0 + jnp.exp(-y))
    o_ref[...] = y.astype(o_ref.dtype)


def linear_act(x, w, b, *, activation=None, positive=False):
    """act(x @ clamp(W, 0 if positive).T + b), single-block fused kernel."""
    bsz, k = x.shape
    n = w.shape[0]
    if positive:
        w = jnp.maximum(w, 0.0)                  # PositiveLinear weight clamp
    wt = w.T                                     # (K, N): MXU-native rhs, no in-kernel .T
    b2 = b.reshape(1, n).astype(jnp.float32)

    b_pad = ((bsz + 7) // 8) * 8
    if b_pad != bsz:
        x = jnp.pad(x, ((0, b_pad - bsz), (0, 0)))

    y = pl.pallas_call(
        functools.partial(_linear_kernel, activation=activation),
        out_shape=jax.ShapeDtypeStruct((b_pad, n), jnp.float32),
        grid_spec=pltpu.PrefetchScalarGridSpec(
            num_scalar_prefetch=0,
            grid=(1,),
            in_specs=[
                pl.BlockSpec((b_pad, k), lambda i: (0, 0)),
                pl.BlockSpec((k, n), lambda i: (0, 0)),
                pl.BlockSpec((1, n), lambda i: (0, 0)),
            ],
            out_specs=pl.BlockSpec((b_pad, n), lambda i: (0, 0)),
        ),
        compiler_params=pltpu.CompilerParams(
            dimension_semantics=("arbitrary",),
            vmem_limit_bytes=32 * 1024 * 1024,
        ),
    )(x, wt, b2)
    return y[:bsz]


# -----------------------------------------------------------------------------
# WTA + full NoseNetDeep forward (inference).
# -----------------------------------------------------------------------------

def wta(x, active_outputs):
    """Dense equivalent of the WTA sparse_coo output: top-k values kept per row, rest 0."""
    # TODO(synk): per-row top-k + sparse COO construction has no clean Pallas TPU
    # equivalent at these sizes; computed with jax.lax.top_k / scatter outside the kernels.
    vals, idxs = jax.lax.top_k(x, active_outputs)
    rows = jnp.arange(x.shape[0])[:, None]
    return jnp.zeros_like(x).at[rows, idxs].set(vals)


def nosenet_deep_forward(x, al_weight, mb_col_idx, lin_weights, lin_biases,
                         hash_length, *, positive=True):
    """NoseNetDeep.forward (inference; dropout is eval-mode identity)."""
    h = x
    if al_weight is not None:                    # optional AL_projection + sigmoid
        h = linear_act(h, al_weight, jnp.zeros((al_weight.shape[0],), jnp.float32),
                       activation="sigmoid", positive=False)
    h = mb_projection(h, mb_col_idx)             # MB_projection (fixed binary sparse)
    h = wta(h, hash_length)                      # WTA
    for w, b in zip(lin_weights[:-1], lin_biases[:-1]):
        h = linear_act(h, w, b, activation="leaky_relu", positive=positive)
        # TODO(synk): training-mode dropout (params['dropout']) not implemented; inference only.
    h = linear_act(h, lin_weights[-1], lin_biases[-1], activation="sigmoid",
                   positive=positive)
    return h


# -----------------------------------------------------------------------------
# Synthetic (deterministic) MB projection and pure-JAX reference.
# -----------------------------------------------------------------------------

def make_mb_projection(in_features, dim_explosion, nb_proj_entries, seed=0):
    """Synthetic proj_matrix: `nb_proj_entries` ones per output row at random columns.
    Returns (col_idx (E, N) int32, dense W (N, K) f32 -- the latter only for checking)."""
    out_features = in_features * dim_explosion
    rng = np.random.RandomState(seed)
    idx = np.zeros((nb_proj_entries, out_features), dtype=np.int32)
    for r in range(out_features):
        idx[:, r] = rng.choice(in_features, size=nb_proj_entries, replace=False)
    w = np.zeros((out_features, in_features), dtype=np.float32)
    w[np.arange(out_features)[None, :], idx] = 1.0
    return jnp.asarray(idx), jnp.asarray(w)


def nosenet_deep_reference(x, al_weight, mb_w_dense, lin_weights, lin_biases,
                           hash_length, *, positive=True):
    h = x
    if al_weight is not None:
        h = 1.0 / (1.0 + jnp.exp(-(h @ al_weight.T)))
    h = h @ mb_w_dense.T
    vals, idxs = jax.lax.top_k(h, hash_length)
    rows = jnp.arange(h.shape[0])[:, None]
    h = jnp.zeros_like(h).at[rows, idxs].set(vals)
    for w, b in zip(lin_weights[:-1], lin_biases[:-1]):
        wp = jnp.maximum(w, 0.0) if positive else w
        h = h @ wp.T + b
        h = jnp.where(h >= 0, h, 0.01 * h)
    wp = jnp.maximum(lin_weights[-1], 0.0) if positive else lin_weights[-1]
    h = h @ wp.T + lin_biases[-1]
    return 1.0 / (1.0 + jnp.exp(-h))


if __name__ == "__main__":
    # Small shapes consistent with NoseNetDeep (AL_projection disabled in these params).
    batch = 8
    nb_features = 32
    dim_explosion = 8            # MB: 32 -> 256
    nb_proj_entries = 4
    mb_activity_ratio = 0.1      # hash_length = 25
    feedforward_layers = [64]
    nb_classes = 10
    positive = True

    mb_out = nb_features * dim_explosion
    hash_length = int(mb_activity_ratio * mb_out)
    layer_specs = [mb_out] + feedforward_layers + [nb_classes]

    keys = jax.random.split(jax.random.PRNGKey(0), 2 + 2 * (len(layer_specs) - 1))
    x = jax.random.normal(keys[0], (batch, nb_features), dtype=jnp.float32)
    mb_idx, mb_w_dense = make_mb_projection(nb_features, dim_explosion,
                                            nb_proj_entries, seed=0)

    lin_ws, lin_bs = [], []
    for li in range(len(layer_specs) - 1):
        fan_in, fan_out = layer_specs[li], layer_specs[li + 1]
        w = jax.random.normal(keys[2 + 2 * li], (fan_out, fan_in),
                              dtype=jnp.float32) * (2.0 / fan_in) ** 0.5
        b = jax.random.normal(keys[3 + 2 * li], (fan_out,), dtype=jnp.float32) * 0.01
        lin_ws.append(w)
        lin_bs.append(b)

    # --- unit check: MB_projection kernel (sparse formulation) vs densified reference ---
    y_mb = jax.block_until_ready(mb_projection(x, mb_idx))
    np.testing.assert_allclose(np.asarray(y_mb), np.asarray(x @ mb_w_dense.T),
                               rtol=1e-5, atol=1e-5)

    # --- end-to-end NoseNetDeep forward (AL disabled) vs pure-JAX reference ---
    y = jax.block_until_ready(
        nosenet_deep_forward(x, None, mb_idx, lin_ws, lin_bs, hash_length,
                             positive=positive))
    y_ref = nosenet_deep_reference(x, None, mb_w_dense, lin_ws, lin_bs, hash_length,
                                   positive=positive)
    np.testing.assert_allclose(np.asarray(y), np.asarray(y_ref), rtol=2e-2, atol=2e-2)

    print("KERNEL_OK")
</pallas_src>

<mosaic_0001>
module attributes {stable_mosaic.version = 11 : i64} {
  func.func @_mb_proj_sparse_kernel(%arg0: i32, %arg1: memref<4x128xi32, #tpu.memory_space<vmem>>, %arg2: memref<8x32xf32, #tpu.memory_space<vmem>>, %arg3: memref<8x128xf32, #tpu.memory_space<vmem>>) attributes {dimension_semantics = [#tpu.dimension_semantics<parallel>], iteration_bounds = array<i64: 2>, scalar_prefetch = 0 : i64, scratch_operands = 0 : i64, tpu.core_type = #tpu.core_type<tc>, window_params = [{transform_indices = @transform_0, window_bounds = array<i64: 4, 128>}, {pipeline_mode = #tpu.pipeline_mode<synchronous>, transform_indices = @transform_1, window_bounds = array<i64: 8, 32>}, {transform_indices = @transform_2, window_bounds = array<i64: 8, 128>}]} {
    %0 = tpu.iota {dimensions = array<i32: 0>} : vector<32x128xi32>
    %c0 = arith.constant 0 : index
    %c0_0 = arith.constant 0 : index
    %1 = vector.load %arg1[%c0, %c0_0] : memref<4x128xi32, #tpu.memory_space<vmem>>, vector<1x128xi32>
    %2 = vector.broadcast %1 : vector<1x128xi32> to vector<32x128xi32>
    %3 = arith.cmpi eq, %0, %2 : vector<32x128xi32>
    %4 = arith.extui %3 : vector<32x128xi1> to vector<32x128xi32>
    %5 = arith.sitofp %4 : vector<32x128xi32> to vector<32x128xf32>
    %c1 = arith.constant 1 : index
    %c0_1 = arith.constant 0 : index
    %6 = vector.load %arg1[%c1, %c0_1] : memref<4x128xi32, #tpu.memory_space<vmem>>, vector<1x128xi32>
    %7 = vector.broadcast %6 : vector<1x128xi32> to vector<32x128xi32>
    %8 = arith.cmpi eq, %0, %7 : vector<32x128xi32>
    %9 = arith.extui %8 : vector<32x128xi1> to vector<32x128xi32>
    %10 = arith.sitofp %9 : vector<32x128xi32> to vector<32x128xf32>
    %11 = arith.addf %5, %10 : vector<32x128xf32>
    %c2 = arith.constant 2 : index
    %c0_2 = arith.constant 0 : index
    %12 = vector.load %arg1[%c2, %c0_2] : memref<4x128xi32, #tpu.memory_space<vmem>>, vector<1x128xi32>
    %13 = vector.broadcast %12 : vector<1x128xi32> to vector<32x128xi32>
    %14 = arith.cmpi eq, %0, %13 : vector<32x128xi32>
    %15 = arith.extui %14 : vector<32x128xi1> to vector<32x128xi32>
    %16 = arith.sitofp %15 : vector<32x128xi32> to vector<32x128xf32>
    %17 = arith.addf %11, %16 : vector<32x128xf32>
    %c3 = arith.constant 3 : index
    %c0_3 = arith.constant 0 : index
    %18 = vector.load %arg1[%c3, %c0_3] : memref<4x128xi32, #tpu.memory_space<vmem>>, vector<1x128xi32>
    %19 = vector.broadcast %18 : vector<1x128xi32> to vector<32x128xi32>
    %20 = arith.cmpi eq, %0, %19 : vector<32x128xi32>
    %21 = arith.extui %20 : vector<32x128xi1> to vector<32x128xi32>
    %22 = arith.sitofp %21 : vector<32x128xi32> to vector<32x128xf32>
    %23 = arith.addf %17, %22 : vector<32x128xf32>
    %c0_4 = arith.constant 0 : index
    %c0_5 = arith.constant 0 : index
    %24 = vector.load %arg2[%c0_4, %c0_5] : memref<8x32xf32, #tpu.memory_space<vmem>>, vector<8x32xf32>
    %cst = arith.constant dense<0.000000e+00> : vector<8x128xf32>
    %25 = tpu.matmul %24, %23, %cst {dimension_numbers = #tpu.dot_dimension_numbers<[1], [0], [0], [1], [0, 0, 1, 1], [], []>} : vector<8x32xf32>, vector<32x128xf32>, vector<8x128xf32> -> vector<8x128xf32>
    %c0_6 = arith.constant 0 : index
    %c0_7 = arith.constant 0 : index
    %26 = vector.load %arg3[%c0_6, %c0_7] : memref<8x128xf32, #tpu.memory_space<vmem>>, vector<8x128xf32>
    tpu.vector_store %arg3[%c0_6, %c0_7], %25 {strides = array<i32>} : memref<8x128xf32, #tpu.memory_space<vmem>>, vector<8x128xf32>,
    return
  }
  func.func @transform_0(%arg0: i32) -> (i32, i32) {
    %c0_i32 = arith.constant 0 : i32
    %c0_i32_0 = arith.constant 0 : i32
    return %c0_i32, %arg0 : i32, i32
  }
  func.func @transform_1(%arg0: i32) -> (i32, i32) {
    %c0_i32 = arith.constant 0 : i32
    %c0_i32_0 = arith.constant 0 : i32
    %c0_i32_1 = arith.constant 0 : i32
    return %c0_i32, %c0_i32_0 : i32, i32
  }
  func.func @transform_2(%arg0: i32) -> (i32, i32) {
    %c0_i32 = arith.constant 0 : i32
    %c0_i32_0 = arith.constant 0 : i32
    return %c0_i32, %arg0 : i32, i32
  }
}

</mosaic_0001>

<llo_original>
// kernel: tpu_custom_call.1
$region0: #{tpu_custom_call.1}
  #allocation0 [shape = 'u32[]', space=smem, size = 0x4, offset = 0x4, fixed_abs, tag = 'smem constant byte address 0x4 - core index']
  #allocation1 [shape = 'u32[72,128]{1,0:T(1,128)}', space=vmem, size = 0x9000, scoped, tag = 'internal scratch']
  %s0 = inlined_call_operand.hbm [shape: s32[4,256], index: 0, kind: input, shape index: {}]
  %s1 = inlined_call_operand.hbm [shape: f32[8,32], index: 1, kind: input, shape index: {}]
  %s2 = inlined_call_operand.hbm [shape: f32[8,256], index: 2, kind: output, shape index: {}]
  %s3 = sld [smem:[#allocation0]]
  $region49: #{tpu_custom_call.1} parent=0
    _
  %s5 = ssub.s32 1, %s3
  %s6 = scalar_select 0, %s5, %s3
  $region1: #{tpu_custom_call.1} parent=0
    #allocation2 [shape = 'u8[4096]{0}', space=vmem, size = 0x1000, scoped, tag = 'input window, operand 0']
    #allocation3 [shape = 's32[2]{0}', space=sflag, size = 0x8, scoped, tag = 'scoped memory for tpu_custom_call.1']
    #allocation4 [shape = 's32[2]{0}', space=sflag, size = 0x8, scoped, tag = 'scoped memory for tpu_custom_call.1']
    #allocation5 [shape = 'u8[4096]{0}', space=vmem, size = 0x1000, scoped, tag = 'input window, operand 1, single buffered']
    #allocation6 [shape = 's32[1]{0}', space=sflag, size = 0x4, scoped, tag = 'scoped memory for tpu_custom_call.1']
    #allocation7 [shape = 'u8[8192]{0}', space=vmem, size = 0x2000, scoped, tag = 'output window, operand 0']
    %7 = vsyncpa [#allocation3], 0
    %s8 = scalar_lea.sflag [#allocation3], 1
    %9 = vsyncpa %s8, 0
    %10 = vsyncpa [#allocation6], 0
    %11 = vsyncpa [#allocation4], 0
    %s12 = scalar_lea.sflag [#allocation4], 1
    %13 = vsyncpa %s12, 0
    loop: start=0, step=1, limit=4
    $region2: #{tpu_custom_call.1} parent=1 // loop_pre_header
      _
    $region3: #{tpu_custom_call.1} parent=1 // loop_header
      %s15 = sphi 0, %s19
      %p16 = scmp.ge.s32.totalorder %s15, 4
      %s25 = sphi 0, %s27
      %s28 = sphi 0, %s25
      %s29 = sphi 0, %s28
      %s45 = sphi 0, %s29
      %s49 = sphi 0, %s49
      %s51 = sphi 0, %s49
      %s52 = sphi 0, %s51
      %s66 = sphi 0, %s52
      %s72 = sphi 0, %s74
      %s75 = sphi 0, %s72
      %s76 = sphi 0, %s75
      %s92 = sphi 0, %s76
    $region4: #{tpu_custom_call.1} parent=1 // loop_header_branch
      %18 = sbr.rel (%p16) target = $region8
    $region5: #{tpu_custom_call.1} parent=1 // loop_body
      %s20 = ssub.s32 %s15, 1
      %s21 = ssub.s32 %s15, 2
      %s22 = sadd.s32 %s15, 1
      %s23 = ssub.s32 %s15, %s22
      %p24 = scmp.eq.s32.totalorder %s23, 0
      %s26 = sadd.s32 %s25, 1
      %s27 = scalar_select %p24, %s25, %s26
      %p30 = pneg %p24
      %p31 = scmp.eq.s32.totalorder %s15, 1
      %p32 = por %p30, %p31
      %p33 = scmp.ne.s32.totalorder %s25, %s28
      %p34 = scmp.eq.s32.totalorder %s15, 0
      %p35 = por %p33, %p34
      %p36 = scmp.ne.s32.totalorder %s25, %s28
      %p37 = scmp.eq.s32.totalorder %s20, 1
      %p38 = por %p36, %p37
      %p39 = scmp.ne.s32.totalorder %s28, %s29
      %p40 = scmp.eq.s32.totalorder %s20, 0
      %p41 = por %p39, %p40
      %p42 = scmp.ne.s32.totalorder %s28, %s29
      %p43 = scmp.eq.s32.totalorder %s21, 1
      %p44 = por %p42, %p43
      %p46 = scmp.ne.s32.totalorder %s29, %s45
      %p47 = scmp.eq.s32.totalorder %s21, 0
      %p48 = por %p46, %p47
      %s50 = sadd.s32 %s49, 1
      %p53 = scmp.eq.s32.totalorder %s15, 1
      %p54 = scmp.ne.s32.totalorder %s49, %s51
      %p55 = scmp.eq.s32.totalorder %s15, 0
      %p56 = por %p54, %p55
      %p57 = scmp.ne.s32.totalorder %s49, %s51
      %p58 = scmp.eq.s32.totalorder %s20, 1
      %p59 = por %p57, %p58
      %p60 = scmp.ne.s32.totalorder %s51, %s52
      %p61 = scmp.eq.s32.totalorder %s20, 0
      %p62 = por %p60, %p61
      %p63 = scmp.ne.s32.totalorder %s51, %s52
      %p64 = scmp.eq.s32.totalorder %s21, 1
      %p65 = por %p63, %p64
      %p67 = scmp.ne.s32.totalorder %s52, %s66
      %p68 = scmp.eq.s32.totalorder %s21, 0
      %p69 = por %p67, %p68
      %s70 = ssub.s32 %s15, %s22
      %p71 = scmp.eq.s32.totalorder %s70, 0
      %s73 = sadd.s32 %s72, 1
      %s74 = scalar_select %p71, %s72, %s73
      %p77 = pneg %p71
      %p78 = scmp.eq.s32.totalorder %s15, 1
      %p79 = por %p77, %p78
      %p80 = scmp.ne.s32.totalorder %s72, %s75
      %p81 = scmp.eq.s32.totalorder %s15, 0
      %p82 = por %p80, %p81
      %p83 = scmp.ne.s32.totalorder %s72, %s75
      %p84 = scmp.eq.s32.totalorder %s20, 1
      %p85 = por %p83, %p84
      %p86 = scmp.ne.s32.totalorder %s75, %s76
      %p87 = scmp.eq.s32.totalorder %s20, 0
      %p88 = por %p86, %p87
      %p89 = scmp.ne.s32.totalorder %s75, %s76
      %p90 = scmp.eq.s32.totalorder %s21, 1
      %p91 = por %p89, %p90
      %p93 = scmp.ne.s32.totalorder %s76, %s92
      %p94 = scmp.eq.s32.totalorder %s21, 0
      %p95 = por %p93, %p94
      %p96 = scmp.le.s32.totalorder 1, %s15
      %p97 = scmp.lt.s32.totalorder %s15, 3
      %p98 = pnand %p96, %p97
      %p99 = pneg %p98
      // Predicated region
      $region9: #{tpu_custom_call.1} parent=5 // pred_check
        _
      $region10: #{tpu_custom_call.1} parent=5 // pred_check_branch
        %101 = sbr.rel (%p98) target = $region12
      $region11: #{tpu_custom_call.1} parent=5 // pred_region
        %s102 = ssub.s32 %s15, 1
        // Predicated region
        $region13: #{tpu_custom_call.1} parent=11 // pred_check
          %p103 = pneg %p62
        $region14: #{tpu_custom_call.1} parent=11 // pred_check_branch
          %105 = sbr.rel (%p103) target = $region16
        $region15: #{tpu_custom_call.1} parent=11 // pred_region
          %107 = vsyncadd [#allocation6], 0
          %s109 = sshll.u32 %s1, 4
          %s110 = int_to_ptr.hbm [resolvable:$true] %s109
          %s111 = sshll.u32 [#allocation5], 4
          %s112 = int_to_ptr.vmem [resolvable:$true] %s111
          %114 = dma.hbm_to_vmem [thread:$0]  %s110, 128, %s112, [#allocation6]
        $region16: #{tpu_custom_call.1} parent=11 // pred_fallthru
          _
      $region12: #{tpu_custom_call.1} parent=5 // pred_fallthru
        _
      %p115 = scmp.lt.s32.totalorder %s15, 2
      // Predicated region
      $region17: #{tpu_custom_call.1} parent=5 // pred_check
        %p116 = pneg %p115
      $region18: #{tpu_custom_call.1} parent=5 // pred_check_branch
        %118 = sbr.rel (%p116) target = $region20
      $region19: #{tpu_custom_call.1} parent=5 // pred_region
        // Predicated region
        $region21: #{tpu_custom_call.1} parent=19 // pred_check
          %p119 = pneg %p35
        $region22: #{tpu_custom_call.1} parent=19 // pred_check_branch
          %121 = sbr.rel (%p119) target = $region24
        $region23: #{tpu_custom_call.1} parent=19 // pred_region
          %s122 = sand.u32 %s25, 1
          %s123 = scalar_lea.sflag [#allocation3], %s122
          %s124 = sand.u32 %s25, 1
          %s125 = smul.addr %s124, 4
          %s126 = scalar_lea.vmem [#allocation2], %s125
          %128 = vsyncadd %s123, 0
          %s129 = smul.addr %s15, 4
          %s130 = scalar_lea.hbm %s0, %s129
          %s132 = sshll.u32 %s130, 4
          %s133 = int_to_ptr.hbm [resolvable:$true] %s132
          %s134 = sshll.u32 %s126, 4
          %s135 = int_to_ptr.vmem [resolvable:$true] %s134
          %137 = dma.hbm_to_vmem [thread:$0]  %s133, 64, %s135, %s123
        $region24: #{tpu_custom_call.1} parent=19 // pred_fallthru
          _
      $region20: #{tpu_custom_call.1} parent=5 // pred_fallthru
        _
      %p138 = scmp.le.s32.totalorder 1, %s15
      %p139 = scmp.lt.s32.totalorder %s15, 3
      %p140 = pnand %p138, %p139
      %p141 = pneg %p140
      // Predicated region
      $region25: #{tpu_custom_call.1} parent=5 // pred_check
        _
      $region26: #{tpu_custom_call.1} parent=5 // pred_check_branch
        %143 = sbr.rel (%p140) target = $region28
      $region27: #{tpu_custom_call.1} parent=5 // pred_region
        %s144 = ssub.s32 %s15, 1
        %s145 = sand.u32 %s28, 1
        %s146 = scalar_lea.sflag [#allocation3], %s145
        %s147 = sand.u32 %s28, 1
        %s148 = smul.addr %s147, 4
        %s149 = scalar_lea.vmem [#allocation2], %s148
        // Predicated region
        $region29: #{tpu_custom_call.1} parent=27 // pred_check
          %p150 = pneg %p41
        $region30: #{tpu_custom_call.1} parent=27 // pred_check_branch
          %152 = sbr.rel (%p150) target = $region32
        $region31: #{tpu_custom_call.1} parent=27 // pred_region
          %154 = dma.done %s146, 64
        $region32: #{tpu_custom_call.1} parent=27 // pred_fallthru
          _
        // Predicated region
        $region33: #{tpu_custom_call.1} parent=27 // pred_check
          %p155 = pneg %p62
        $region34: #{tpu_custom_call.1} parent=27 // pred_check_branch
          %157 = sbr.rel (%p155) target = $region36
        $region35: #{tpu_custom_call.1} parent=27 // pred_region
          %159 = dma.done [#allocation6], 128
        $region36: #{tpu_custom_call.1} parent=27 // pred_fallthru
          _
        %s160 = sand.u32 %s28, 1
        %s161 = scalar_lea.sflag [#allocation3], %s160
        %s162 = sand.u32 %s28, 1
        %s163 = smul.addr %s162, 4
        %s164 = scalar_lea.vmem [#allocation2], %s163
        %p165 = pneg %p41
        %p166 = pneg %p38
        %p167 = pneg %p62
        %p168 = pneg %p59
        %p169 = pneg %p88
        %p170 = pneg %p85
        %s171 = sand.u32 %s75, 1
        %s172 = scalar_lea.sflag [#allocation4], %s171
        %s173 = sand.u32 %s75, 1
        %s174 = smul.addr %s173, 8
        %s175 = scalar_lea.vmem [#allocation7], %s174
        %v176 = vlaneseq
        %v177 = vshrl.u32 %v176, 7
        %v178 = vadd.s32 %v177, 8
        %v179 = vadd.s32 %v177, 16
        %v180 = vadd.s32 %v177, 24
        %v181 = vld [vmem:[%s149] sm:$0x1]
        %v182 = vperm.slane %v181, 0
        %vm183 = vcmp.eq.s32.totalorder %v177, %v182
        %vm184 = vcmp.eq.s32.totalorder %v178, %v182
        %vm185 = vcmp.eq.s32.totalorder %v179, %v182
        %vm186 = vcmp.eq.s32.totalorder %v180, %v182
        %v187 = vsel %vm183, 1, 0
        %v188 = vsel %vm184, 1, 0
        %v189 = vsel %vm185, 1, 0
        %v190 = vsel %vm186, 1, 0
        %v191 = vcvt.s32.f32 %v187
        %v192 = vcvt.s32.f32 %v188
        %v193 = vcvt.s32.f32 %v189
        %v194 = vcvt.s32.f32 %v190
        %v195 = vld [vmem:[%s149 + $0x1] sm:$0x1]
        %v196 = vperm.slane %v195, 0
        %vm197 = vcmp.eq.s32.totalorder %v177, %v196
        %vm198 = vcmp.eq.s32.totalorder %v178, %v196
        %vm199 = vcmp.eq.s32.totalorder %v179, %v196
        %vm200 = vcmp.eq.s32.totalorder %v180, %v196
        %v201 = vsel %vm197, 1, 0
        %v202 = vsel %vm198, 1, 0
        %v203 = vsel %vm199, 1, 0
        %v204 = vsel %vm200, 1, 0
        %v205 = vcvt.s32.f32 %v201
        %v206 = vcvt.s32.f32 %v202
        %v207 = vcvt.s32.f32 %v203
        %v208 = vcvt.s32.f32 %v204
        %v209 = vadd.f32 %v191, %v205
        %v210 = vadd.f32 %v192, %v206
        %v211 = vadd.f32 %v193, %v207
        %v212 = vadd.f32 %v194, %v208
        %v213 = vld [vmem:[%s149 + $0x2] sm:$0x1]
        %v214 = vperm.slane %v213, 0
        %vm215 = vcmp.eq.s32.totalorder %v177, %v214
        %vm216 = vcmp.eq.s32.totalorder %v178, %v214
        %vm217 = vcmp.eq.s32.totalorder %v179, %v214
        %vm218 = vcmp.eq.s32.totalorder %v180, %v214
        %v219 = vsel %vm215, 1, 0
        %v220 = vsel %vm216, 1, 0
        %v221 = vsel %vm217, 1, 0
        %v222 = vsel %vm218, 1, 0
        %v223 = vcvt.s32.f32 %v219
        %v224 = vcvt.s32.f32 %v220
        %v225 = vcvt.s32.f32 %v221
        %v226 = vcvt.s32.f32 %v222
        %v227 = vadd.f32 %v209, %v223
        %v228 = vadd.f32 %v210, %v224
        %v229 = vadd.f32 %v211, %v225
        %v230 = vadd.f32 %v212, %v226
        %v231 = vld [vmem:[%s149 + $0x3] sm:$0x1]
        %v232 = vperm.slane %v231, 0
        %vm233 = vcmp.eq.s32.totalorder %v177, %v232
        %vm234 = vcmp.eq.s32.totalorder %v178, %v232
        %vm235 = vcmp.eq.s32.totalorder %v179, %v232
        %vm236 = vcmp.eq.s32.totalorder %v180, %v232
        %v237 = vsel %vm233, 1, 0
        %v238 = vsel %vm234, 1, 0
        %v239 = vsel %vm235, 1, 0
        %v240 = vsel %vm236, 1, 0
        %v241 = vcvt.s32.f32 %v237
        %v242 = vcvt.s32.f32 %v238
        %v243 = vcvt.s32.f32 %v239
        %v244 = vcvt.s32.f32 %v240
        %v245 = vadd.f32 %v227, %v241
        %v246 = vadd.f32 %v228, %v242
        %v247 = vadd.f32 %v229, %v243
        %v248 = vadd.f32 %v230, %v244
        %v249 = vld [vmem:[#allocation5] sm:$0xff]
        %vm250 = vcmask 261120
        %v252 = vsel %vm250, %v249, 0
        %254 = vmatpush.msra.mxu0 0.0
        %255 = vmatpush.msra.mxu0 0.0
        %256 = vmatpush.msra.mxu0 0.0
        %257 = vmatpush.msra.mxu0 0.0
        %258 = vmatpush.msra.mxu0 0.0
        %259 = vmatpush.msra.mxu0 0.0
        %260 = vmatpush.msra.mxu0 0.0
        %261 = vmatpush.msra.mxu0 0.0
        %262 = vmatpush.msra.mxu0 0.0
        %263 = vmatpush.msra.mxu0 0.0
        %264 = vmatpush.msra.mxu0 0.0
        %265 = vmatpush.msra.mxu0 0.0
        %266 = vmatpush.msra.mxu0 %v248
        %267 = vmatpush.msra.mxu0 %v247
        %268 = vmatpush.msra.mxu0 %v246
        %269 = vmatpush.msra.mxu0 %v245
        %270 = vmatmul.f32.gmra.mxu0 %v252
        %v271 = vpop.f32.mrf.mxu0
        %v272 = vadd.f32 0.0, %v271
        %273 = vdwg.mxu0
        %274 = vst [vmem:[%s175] sm:$0xff] %v272
        %s275 = sand.u32 %s75, 1
        %s276 = scalar_lea.sflag [#allocation4], %s275
        %s277 = sand.u32 %s75, 1
        %s278 = smul.addr %s277, 8
        %s279 = scalar_lea.vmem [#allocation7], %s278
        // Predicated region
        $region37: #{tpu_custom_call.1} parent=27 // pred_check
          %p280 = pneg %p85
        $region38: #{tpu_custom_call.1} parent=27 // pred_check_branch
          %282 = sbr.rel (%p280) target = $region40
        $region39: #{tpu_custom_call.1} parent=27 // pred_region
          %284 = vsyncadd %s276, 0
          %s285 = smul.addr %s20, 8
          %s286 = scalar_lea.hbm %s2, %s285
          %s288 = sshll.u32 %s279, 4
          %s289 = int_to_ptr.vmem [resolvable:$true] %s288
          %s290 = sshll.u32 %s286, 4
          %s291 = int_to_ptr.hbm [resolvable:$true] %s290
          %293 = dma.vmem_to_hbm [thread:$0]  %s289, 128, %s291, %s276
        $region40: #{tpu_custom_call.1} parent=27 // pred_fallthru
          _
      $region28: #{tpu_custom_call.1} parent=5 // pred_fallthru
        _
      %p294 = scmp.le.s32.totalorder 2, %s15
      // Predicated region
      $region41: #{tpu_custom_call.1} parent=5 // pred_check
        %p295 = pneg %p294
      $region42: #{tpu_custom_call.1} parent=5 // pred_check_branch
        %297 = sbr.rel (%p295) target = $region44
      $region43: #{tpu_custom_call.1} parent=5 // pred_region
        %s298 = ssub.s32 %s15, 2
        // Predicated region
        $region45: #{tpu_custom_call.1} parent=43 // pred_check
          %p299 = pneg %p91
        $region46: #{tpu_custom_call.1} parent=43 // pred_check_branch
          %301 = sbr.rel (%p299) target = $region48
        $region47: #{tpu_custom_call.1} parent=43 // pred_region
          %s302 = sand.u32 %s76, 1
          %s303 = scalar_lea.sflag [#allocation4], %s302
          %s304 = sand.u32 %s76, 1
          %s305 = smul.addr %s304, 8
          %s306 = scalar_lea.vmem [#allocation7], %s305
          %308 = dma.done %s303, 128
        $region48: #{tpu_custom_call.1} parent=43 // pred_fallthru
          _
      $region44: #{tpu_custom_call.1} parent=5 // pred_fallthru
        _
    $region6: #{tpu_custom_call.1} parent=1 // loop_footer
      %s19 = sadd.s32 1, %s15
    $region7: #{tpu_custom_call.1} parent=1 // loop_footer_branch
      %14 = sbr.rel target = $region3
    $region8: #{tpu_custom_call.1} parent=1 // loop_exit
      _
    %309 = vsyncpa [#allocation3], 1
    %s310 = scalar_lea.sflag [#allocation3], 1
    %311 = vsyncpa %s310, 1
    %312 = vsyncpa [#allocation6], 1
    %313 = vsyncpa [#allocation4], 1
    %s314 = scalar_lea.sflag [#allocation4], 1
    %315 = vsyncpa %s314, 1

</llo_original>
